<compile_context>
chip_gen: v6e
topology: v6e:2x2x1
jax: 0.10.0
libtpu: 0.0.40
codegen_flags: <defaults>
</compile_context>

<pallas_src>
import functools

import jax
import jax.numpy as jnp
from jax.experimental import pallas as pl
from jax.experimental.pallas import tpu as pltpu

_MiB = 1024 * 1024


# ----------------------------- fused kernels ---------------------------------
def _fused_kernel_inplace(x_ref, we_ref, be_ref, wd_ref, bd_ref, o_ref):
    """float32 output: accumulate decode partials directly into the resident
    output block (its block index is constant across the F axis)."""
    j = pl.program_id(1)

    # encode this F-tile: (tb, K) @ (K, tf) + b_enc, then ReLU (f32 accumulate)
    f_tile = jnp.maximum(
        jnp.dot(x_ref[...], we_ref[...], preferred_element_type=jnp.float32)
        + be_ref[...].astype(jnp.float32),
        0.0,
    )
    # partial decode: (tb, tf) @ (tf, K)
    partial = jnp.dot(
        f_tile.astype(wd_ref.dtype), wd_ref[...],
        preferred_element_type=jnp.float32,
    )

    @pl.when(j == 0)
    def _():
        o_ref[...] = bd_ref[...].astype(jnp.float32) + partial

    @pl.when(j > 0)
    def _():
        o_ref[...] += partial


def _fused_kernel_scratch(x_ref, we_ref, be_ref, wd_ref, bd_ref, o_ref, acc_ref):
    """non-float32 output: accumulate in an f32 VMEM scratch, cast once at end."""
    j = pl.program_id(1)

    f_tile = jnp.maximum(
        jnp.dot(x_ref[...], we_ref[...], preferred_element_type=jnp.float32)
        + be_ref[...].astype(jnp.float32),
        0.0,
    )
    partial = jnp.dot(
        f_tile.astype(wd_ref.dtype), wd_ref[...],
        preferred_element_type=jnp.float32,
    )

    @pl.when(j == 0)
    def _():
        acc_ref[...] = bd_ref[...].astype(jnp.float32) + partial

    @pl.when(j > 0)
    def _():
        acc_ref[...] += partial

    @pl.when(j == pl.num_programs(1) - 1)
    def _():
        o_ref[...] = acc_ref[...].astype(o_ref.dtype)


# ------------------------------- helpers --------------------------------------
def _round_up(x, m):
    return ((x + m - 1) // m) * m


def _choose_tile(dim, cap, granule):
    """Pick (tile, padded_dim) with tile | padded_dim, both granule-aligned,
    tile <= max(granule, cap rounded down to granule)."""
    cap = max(granule, (cap // granule) * granule)
    if dim <= cap:
        t = _round_up(dim, granule)
        return t, t
    t = cap
    while t >= granule:
        if dim % t == 0:
            return t, dim
        t -= granule
    # no granule-aligned divisor <= cap: pad dim up to a multiple of cap
    return cap, _round_up(dim, cap)


def _hw_config():
    """Generation-aware defaults, keyed off per-core VMEM capacity."""
    vmem_cap = 128 * _MiB
    try:
        vmem_cap = int(pltpu.get_tpu_info().vmem_capacity_bytes)
    except Exception:
        pass
    if vmem_cap <= 64 * _MiB:
        # v7x-class: 64 MiB/core, 2 TensorCores, ~310 flop/byte bf16 roofline.
        return dict(tile_b=512, tile_f=256, vmem_limit=52 * _MiB,
                    two_batch_tiles=True)
    # v5e / v6e class: 128 MiB, single TensorCore (tb=512 clears both rooflines
    # for bf16 weights).  On v5e, tile_f=1024 can be passed to cut F steps.
    return dict(tile_b=512, tile_f=512, vmem_limit=100 * _MiB,
                two_batch_tiles=False)


def _vmem_estimate(tb, tf, K, bw_in, bw_w, bw_out, needs_scratch):
    """Rough double-buffered working-set size in bytes."""
    est = 2 * tb * K * bw_in          # x tile
    est += 2 * K * tf * bw_w          # W_enc tile
    est += 2 * 8 * tf * bw_w          # b_enc tile (sublane padded)
    est += 2 * tf * K * bw_w          # W_dec tile
    est += 2 * 8 * K * bw_w           # b_dec
    est += 2 * tb * K * bw_out        # resident output block
    est += tb * tf * 4                # f (code) intermediate
    if needs_scratch:
        est += tb * K * 4             # f32 accumulator scratch
    return est


def _select_tiles(B, F, K, bw_in, bw_w, bw_out, needs_scratch, cfg,
                  tile_b, tile_f, b_granule, f_granule):
    budget = int(cfg["vmem_limit"] * 0.9)
    tb_cap = tile_b if tile_b is not None else cfg["tile_b"]
    tf_cap = tile_f if tile_f is not None else cfg["tile_f"]

    # Small-model weight pinning: both full weights (double-buffered) fit in
    # ~half the budget -> single F step, weights DMA'd exactly once.
    if tile_f is None and 4 * K * F * bw_w <= budget // 2:
        tf_cap = max(tf_cap, F)

    tb, B_pad = _choose_tile(B, tb_cap, b_granule)
    tf, F_pad = _choose_tile(F, tf_cap, f_granule)

    # Fit within the VMEM budget: shrink tf first (keeps arithmetic intensity,
    # which scales with tb), then tb.
    while _vmem_estimate(tb, tf, K, bw_in, bw_w, bw_out, needs_scratch) > budget:
        if tf > f_granule:
            tf_cap = max(f_granule, tf // 2)
            tf, F_pad = _choose_tile(F, tf_cap, f_granule)
        elif tb > b_granule:
            tb_cap = max(b_granule, tb // 2)
            tb, B_pad = _choose_tile(B, tb_cap, b_granule)
        else:
            break  # minimum tiles already; let the compiler have it

    # v7x: make the "parallel" batch axis span both TensorCores.
    if (cfg["two_batch_tiles"] and tile_b is None
            and B_pad // tb < 2 and B_pad >= 2 * b_granule):
        tb = _round_up(-(-B_pad // 2), b_granule)
        B_pad = 2 * tb

    return tb, B_pad, tf, F_pad


def prepare_crosscoder_params(enc_w, enc_b, dec_w, dec_b):
    """One-time parameter prep (amortized over all forward calls).

    enc_w : (L, D, F) -> (L*D, F)   free, contiguous reshape
    enc_b : (F,)      -> (1, F)
    dec_w : (L, F, D) -> (F, L*D)   one-time transpose + reshape
    dec_b : (L, D)    -> (1, L*D)   free, contiguous reshape

    For production runs weights should be bf16 (native MXU mode, half the
    dominant weight HBM stream).
    """
    L, D, F = enc_w.shape
    K = L * D
    we = enc_w.reshape(K, F)
    be = enc_b.reshape(1, F)
    wd = jnp.transpose(dec_w, (1, 0, 2)).reshape(F, K)
    bd = dec_b.reshape(1, K)
    return we, be, wd, bd


# ------------------------------- forward --------------------------------------
def crosscoder_forward(x_bld, we, be, wd, bd, *,
                       tile_b=None, tile_f=None, vmem_limit_bytes=None):
    """
    x_bld : (B, L, D) activations (PyTorch layout)
    we    : (L*D, F)  flattened encoder weight
    be    : (1, F)    encoder bias
    wd    : (F, L*D)  flattened decoder weight
    bd    : (1, L*D)  flattened decoder bias
    tile_b/tile_f/vmem_limit_bytes : optional overrides; None -> generation-aware.
    returns x_hat : (B, L, D)
    """
    B, L, D = x_bld.shape
    K = L * D                      # encode reduction dim == decode output width
    F = we.shape[1]

    compute_dtype = we.dtype       # run the MXU in the weights' dtype
    out_dtype = x_bld.dtype
    needs_scratch = out_dtype != jnp.float32

    cfg = _hw_config()
    if vmem_limit_bytes is not None:
        cfg = dict(cfg, vmem_limit=vmem_limit_bytes)

    bw_in = jnp.dtype(compute_dtype).itemsize
    bw_w = jnp.dtype(we.dtype).itemsize
    bw_out = jnp.dtype(out_dtype).itemsize
    b_granule = 8 if bw_in >= 4 else (16 if bw_in == 2 else 32)
    f_granule = 256                # MXU-aligned on v6e/v7x (128 is enough on v5e)

    tb, B_pad, tf, F_pad = _select_tiles(
        B, F, K, bw_in, bw_w, bw_out, needs_scratch, cfg,
        tile_b, tile_f, b_granule, f_granule)

    # Lane-dense flattened activation view (free reshape), cast to weight dtype
    # so the matmuls run natively on the MXU (no silent f32 promotion).
    x_flat = x_bld.reshape(B, K).astype(compute_dtype)

    # Zero-padding is numerically neutral: padded x rows are sliced away below;
    # padded F columns give f = relu(0 + 0) = 0 which contributes nothing to
    # the decode.
    if B_pad != B:
        x_flat = jnp.pad(x_flat, ((0, B_pad - B), (0, 0)))
    if F_pad != F:
        we = jnp.pad(we, ((0, 0), (0, F_pad - F)))
        be = jnp.pad(be, ((0, 0), (0, F_pad - F)))
        wd = jnp.pad(wd, ((0, F_pad - F), (0, 0)))

    grid = (B_pad // tb, F_pad // tf)

    in_specs = [
        pl.BlockSpec((tb, K), lambda i, j: (i, 0)),   # x: reused across all F tiles
        pl.BlockSpec((K, tf), lambda i, j: (0, j)),   # W_enc tile (streams over F)
        pl.BlockSpec((1, tf), lambda i, j: (0, j)),   # b_enc tile
        pl.BlockSpec((tf, K), lambda i, j: (j, 0)),   # W_dec tile (streams over F)
        pl.BlockSpec((1, K), lambda i, j: (0, 0)),    # b_dec (tiny, whole)
    ]
    # Output block index constant across j -> resident decode accumulator.
    out_specs = pl.BlockSpec((tb, K), lambda i, j: (i, 0))

    if not needs_scratch:
        kernel = _fused_kernel_inplace
        scratch_shapes = []
    else:
        kernel = _fused_kernel_scratch
        scratch_shapes = [pltpu.VMEM((tb, K), jnp.float32)]

    x_hat_flat = pl.pallas_call(
        kernel,
        out_shape=jax.ShapeDtypeStruct((B_pad, K), out_dtype),
        grid_spec=pltpu.PrefetchScalarGridSpec(
            num_scalar_prefetch=0,
            grid=grid,
            in_specs=in_specs,
            out_specs=out_specs,
            scratch_shapes=scratch_shapes,
        ),
        compiler_params=pltpu.CompilerParams(
            dimension_semantics=("parallel", "arbitrary"),
            vmem_limit_bytes=cfg["vmem_limit"],
        ),
    )(x_flat, we, be, wd, bd)

    if B_pad != B:
        x_hat_flat = x_hat_flat[:B]
    return x_hat_flat.reshape(B, L, D)   # free reshape back to PyTorch layout


# ------------------------------ reference --------------------------------------
def crosscoder_ref(x_bld, enc_w, enc_b, dec_w, dec_b):
    f32 = jnp.float32
    f = jnp.einsum("bld,ldf->blf", x_bld.astype(f32), enc_w.astype(f32))
    f = jax.nn.relu(f.sum(axis=1) + enc_b.astype(f32))
    x_hat = jnp.einsum("bf,lfd->bld", f, dec_w.astype(f32)) + dec_b.astype(f32)
    return x_hat


# --------------------------------- main -----------------------------------------
if __name__ == "__main__":
    # Small shapes consistent with the module:
    #   CrossCoder(activation_dim=128, dict_size=1024, num_layers=2), batch 16.
    B, L, D, F = 16, 2, 128, 1024
    key = jax.random.PRNGKey(0)
    kx, kw = jax.random.split(key)

    # Deterministic kaiming-uniform-like init; decoder weight is the transpose
    # of the encoder weight (init_with_transpose=True), biases zero.
    bound = (6.0 / D) ** 0.5 / 3.0
    enc_w = jax.random.uniform(kw, (L, D, F), jnp.float32, -bound, bound)
    enc_b = jnp.zeros((F,), jnp.float32)
    dec_w = jnp.transpose(enc_w, (0, 2, 1))        # (L, F, D)
    dec_b = jnp.zeros((L, D), jnp.float32)
    x = jax.random.normal(kx, (B, L, D), jnp.float32)

    params = prepare_crosscoder_params(enc_w, enc_b, dec_w, dec_b)
    x_hat_ref = crosscoder_ref(x, enc_w, enc_b, dec_w, dec_b)

    # ---- f32, explicit small tiles: exercises both grid axes + F accumulation ----
    fwd_small = jax.jit(functools.partial(crosscoder_forward, tile_b=8, tile_f=256))
    x_hat = jax.block_until_ready(fwd_small(x, *params))
    assert x_hat.shape == (B, L, D)
    assert jnp.allclose(x_hat, x_hat_ref, atol=1e-4, rtol=1e-4), "f32 tiled mismatch"

    # ---- f32, generation-aware auto tiles (weight pinning path on small models) ----
    fwd_auto = jax.jit(crosscoder_forward)
    x_hat_a = jax.block_until_ready(fwd_auto(x, *params))
    assert jnp.allclose(x_hat_a, x_hat_ref, atol=1e-4, rtol=1e-4), "f32 auto mismatch"

    # ---- bf16 weights + activations (native bf16 MXU, f32 accumulation) ----
    bf16 = jnp.bfloat16
    params_bf16 = prepare_crosscoder_params(
        enc_w.astype(bf16), enc_b.astype(bf16), dec_w.astype(bf16), dec_b.astype(bf16)
    )
    fwd_bf16 = jax.jit(functools.partial(crosscoder_forward, tile_b=16, tile_f=256))
    x_hat_b = jax.block_until_ready(fwd_bf16(x.astype(bf16), *params_bf16))
    x_hat_b_ref = crosscoder_ref(
        x.astype(bf16), enc_w.astype(bf16), enc_b.astype(bf16),
        dec_w.astype(bf16), dec_b.astype(bf16),
    )
    assert x_hat_b.dtype == bf16 and x_hat_b.shape == (B, L, D)
    assert jnp.allclose(
        x_hat_b.astype(jnp.float32), x_hat_b_ref, atol=5e-2, rtol=5e-2
    ), "bf16 mismatch"

    print("KERNEL_OK")
</pallas_src>

<mosaic_0001>
module attributes {stable_mosaic.version = 11 : i64} {
  func.func @_fused_kernel_inplace(%arg0: i32, %arg1: i32, %arg2: memref<8x256xf32, #tpu.memory_space<vmem>>, %arg3: memref<256x256xf32, #tpu.memory_space<vmem>>, %arg4: memref<1x256xf32, #tpu.memory_space<vmem>>, %arg5: memref<256x256xf32, #tpu.memory_space<vmem>>, %arg6: memref<1x256xf32, #tpu.memory_space<vmem>>, %arg7: memref<8x256xf32, #tpu.memory_space<vmem>>) attributes {dimension_semantics = [#tpu.dimension_semantics<parallel>, #tpu.dimension_semantics<arbitrary>], iteration_bounds = array<i64: 2, 4>, scalar_prefetch = 0 : i64, scratch_operands = 0 : i64, tpu.core_type = #tpu.core_type<tc>, window_params = [{transform_indices = @transform_0, window_bounds = array<i64: 8, 256>}, {transform_indices = @transform_1, window_bounds = array<i64: 256, 256>}, {transform_indices = @transform_2, window_bounds = array<i64: 1, 256>}, {transform_indices = @transform_3, window_bounds = array<i64: 256, 256>}, {pipeline_mode = #tpu.pipeline_mode<synchronous>, transform_indices = @transform_4, window_bounds = array<i64: 1, 256>}, {transform_indices = @transform_5, window_bounds = array<i64: 8, 256>}]} {
    %c0 = arith.constant 0 : index
    %c0_0 = arith.constant 0 : index
    %0 = vector.load %arg2[%c0, %c0_0] : memref<8x256xf32, #tpu.memory_space<vmem>>, vector<8x256xf32>
    %c0_1 = arith.constant 0 : index
    %c0_2 = arith.constant 0 : index
    %1 = vector.load %arg3[%c0_1, %c0_2] : memref<256x256xf32, #tpu.memory_space<vmem>>, vector<256x256xf32>
    %cst = arith.constant dense<0.000000e+00> : vector<8x256xf32>
    %2 = tpu.matmul %0, %1, %cst {dimension_numbers = #tpu.dot_dimension_numbers<[1], [0], [0], [1], [0, 0, 1, 1], [], []>} : vector<8x256xf32>, vector<256x256xf32>, vector<8x256xf32> -> vector<8x256xf32>
    %c0_3 = arith.constant 0 : index
    %c0_4 = arith.constant 0 : index
    %3 = vector.load %arg4[%c0_3, %c0_4] : memref<1x256xf32, #tpu.memory_space<vmem>>, vector<1x256xf32>
    %4 = vector.broadcast %3 : vector<1x256xf32> to vector<8x256xf32>
    %5 = arith.addf %2, %4 : vector<8x256xf32>
    %cst_5 = arith.constant 0.000000e+00 : f32
    %6 = vector.broadcast %cst_5 : f32 to vector<8x256xf32>
    %7 = arith.maximumf %5, %6 : vector<8x256xf32>
    %c0_6 = arith.constant 0 : index
    %c0_7 = arith.constant 0 : index
    %8 = vector.load %arg5[%c0_6, %c0_7] : memref<256x256xf32, #tpu.memory_space<vmem>>, vector<256x256xf32>
    %cst_8 = arith.constant dense<0.000000e+00> : vector<8x256xf32>
    %9 = tpu.matmul %7, %8, %cst_8 {dimension_numbers = #tpu.dot_dimension_numbers<[1], [0], [0], [1], [0, 0, 1, 1], [], []>} : vector<8x256xf32>, vector<256x256xf32>, vector<8x256xf32> -> vector<8x256xf32>
    %c0_i32 = arith.constant 0 : i32
    %10 = arith.cmpi eq, %arg1, %c0_i32 : i32
    %11 = arith.extui %10 : i1 to i32
    %c0_i32_9 = arith.constant 0 : i32
    %12 = arith.cmpi ne, %11, %c0_i32_9 : i32
    scf.if %12 {
      %c0_12 = arith.constant 0 : index
      %c0_13 = arith.constant 0 : index
      %16 = vector.load %arg6[%c0_12, %c0_13] : memref<1x256xf32, #tpu.memory_space<vmem>>, vector<1x256xf32>
      %17 = vector.broadcast %16 : vector<1x256xf32> to vector<8x256xf32>
      %18 = arith.addf %17, %9 : vector<8x256xf32>
      %c0_14 = arith.constant 0 : index
      %c0_15 = arith.constant 0 : index
      %19 = vector.load %arg7[%c0_14, %c0_15] : memref<8x256xf32, #tpu.memory_space<vmem>>, vector<8x256xf32>
      tpu.vector_store %arg7[%c0_14, %c0_15], %18 {strides = array<i32>} : memref<8x256xf32, #tpu.memory_space<vmem>>, vector<8x256xf32>,
    } else {
    }
    %c0_i32_10 = arith.constant 0 : i32
    %13 = arith.cmpi sgt, %arg1, %c0_i32_10 : i32
    %14 = arith.extui %13 : i1 to i32
    %c0_i32_11 = arith.constant 0 : i32
    %15 = arith.cmpi ne, %14, %c0_i32_11 : i32
    scf.if %15 {
      %c0_12 = arith.constant 0 : index
      %c0_13 = arith.constant 0 : index
      %16 = vector.load %arg7[%c0_12, %c0_13] : memref<8x256xf32, #tpu.memory_space<vmem>>, vector<8x256xf32>
      %17 = arith.addf %16, %9 : vector<8x256xf32>
      %c0_14 = arith.constant 0 : index
      %c0_15 = arith.constant 0 : index
      %18 = vector.load %arg7[%c0_14, %c0_15] : memref<8x256xf32, #tpu.memory_space<vmem>>, vector<8x256xf32>
      tpu.vector_store %arg7[%c0_14, %c0_15], %17 {strides = array<i32>} : memref<8x256xf32, #tpu.memory_space<vmem>>, vector<8x256xf32>,
    } else {
    }
    return
  }
  func.func @transform_0(%arg0: i32, %arg1: i32) -> (i32, i32) {
    %c0_i32 = arith.constant 0 : i32
    %c0_i32_0 = arith.constant 0 : i32
    return %arg0, %c0_i32 : i32, i32
  }
  func.func @transform_1(%arg0: i32, %arg1: i32) -> (i32, i32) {
    %c0_i32 = arith.constant 0 : i32
    %c0_i32_0 = arith.constant 0 : i32
    return %c0_i32, %arg1 : i32, i32
  }
  func.func @transform_2(%arg0: i32, %arg1: i32) -> (i32, i32) {
    %c0_i32 = arith.constant 0 : i32
    %c0_i32_0 = arith.constant 0 : i32
    return %c0_i32, %arg1 : i32, i32
  }
  func.func @transform_3(%arg0: i32, %arg1: i32) -> (i32, i32) {
    %c0_i32 = arith.constant 0 : i32
    %c0_i32_0 = arith.constant 0 : i32
    return %arg1, %c0_i32 : i32, i32
  }
  func.func @transform_4(%arg0: i32, %arg1: i32) -> (i32, i32) {
    %c0_i32 = arith.constant 0 : i32
    %c0_i32_0 = arith.constant 0 : i32
    %c0_i32_1 = arith.constant 0 : i32
    return %c0_i32, %c0_i32_0 : i32, i32
  }
  func.func @transform_5(%arg0: i32, %arg1: i32) -> (i32, i32) {
    %c0_i32 = arith.constant 0 : i32
    %c0_i32_0 = arith.constant 0 : i32
    return %arg0, %c0_i32 : i32, i32
  }
}

</mosaic_0001>

<llo_original>
// kernel: crosscoder_forward.1
$region0: #{crosscoder_forward.1}
  #allocation0 [shape = 'u32[]', space=smem, size = 0x4, offset = 0x4, fixed_abs, tag = 'smem constant byte address 0x4 - core index']
  #allocation1 [shape = 'u32[144,128]{1,0:T(1,128)}', space=vmem, size = 0x12000, scoped, tag = 'internal scratch']
  %s0 = inlined_call_operand.vmem [shape: f32[16,256], index: 0, kind: input, shape index: {}]
  %s1 = inlined_call_operand.hbm [shape: f32[256,1024], index: 1, kind: input, shape index: {}]
  %s2 = inlined_call_operand.vmem [shape: f32[1,1024], index: 2, kind: input, shape index: {}]
  %s3 = inlined_call_operand.hbm [shape: f32[1024,256], index: 3, kind: input, shape index: {}]
  %s4 = inlined_call_operand.vmem [shape: f32[1,256], index: 4, kind: input, shape index: {}]
  %s5 = inlined_call_operand.vmem [shape: f32[16,256], index: 5, kind: output, shape index: {}]
  %s6 = sld [smem:[#allocation0]]
  $region69: #{crosscoder_forward.1} parent=0
    _
  %s8 = ssub.s32 1, %s6
  %s9 = scalar_select 0, %s8, %s6
  $region1: #{crosscoder_forward.1} parent=0
    #allocation2 [shape = 'u8[524288]{0}', space=vmem, size = 0x80000, scoped, tag = 'input window, operand 1']
    #allocation3 [shape = 's32[2]{0}', space=sflag, size = 0x8, scoped, tag = 'scoped memory for crosscoder_forward.1']
    #allocation4 [shape = 'u8[524288]{0}', space=vmem, size = 0x80000, scoped, tag = 'input window, operand 3']
    #allocation5 [shape = 's32[2]{0}', space=sflag, size = 0x8, scoped, tag = 'scoped memory for crosscoder_forward.1']
    %10 = vsyncpa [#allocation3], 0
    %s11 = scalar_lea.sflag [#allocation3], 1
    %12 = vsyncpa %s11, 0
    %13 = vsyncpa [#allocation5], 0
    %s14 = scalar_lea.sflag [#allocation5], 1
    %15 = vsyncpa %s14, 0
    loop: start=0, step=1, limit=10
    $region2: #{crosscoder_forward.1} parent=1 // loop_pre_header
      _
    $region3: #{crosscoder_forward.1} parent=1 // loop_header
      %s17 = sphi 0, %s21
      %p18 = scmp.ge.s32.totalorder %s17, 10
      %s24 = sphi 0, %s36
      %s25 = sphi 0, %s32
      %s26 = sphi 0, %s24
      %s27 = sphi 0, %s25
      %s28 = sphi 0, %s26
      %s29 = sphi 0, %s27
      %s39 = sphi 0, %s41
      %s42 = sphi 0, %s39
      %s43 = sphi 0, %s42
      %s59 = sphi 0, %s43
      %s65 = sphi 0, %s67
      %s68 = sphi 0, %s65
      %s69 = sphi 0, %s68
      %s85 = sphi 0, %s69
      %s91 = sphi 0, %s93
      %s94 = sphi 0, %s91
      %s95 = sphi 0, %s94
      %s111 = sphi 0, %s95
      %s117 = sphi 0, %s119
      %s120 = sphi 0, %s117
      %s121 = sphi 0, %s120
      %s137 = sphi 0, %s121
      %s141 = sphi 0, %s141
      %s143 = sphi 0, %s141
      %s144 = sphi 0, %s143
      %s158 = sphi 0, %s144
      %s164 = sphi 0, %s166
      %s167 = sphi 0, %s164
      %s168 = sphi 0, %s167
      %s184 = sphi 0, %s168
    $region4: #{crosscoder_forward.1} parent=1 // loop_header_branch
      %20 = sbr.rel (%p18) target = $region8
    $region5: #{crosscoder_forward.1} parent=1 // loop_body
      %s22 = ssub.s32 %s17, 1
      %s23 = ssub.s32 %s17, 2
      %s30 = sadd.s32 1, %s25
      %p31 = scmp.ge.s32.totalorder %s30, 4
      %s32 = scalar_select %p31, 0, %s30
      %s33 = sadd.s32 1, %s24
      %s34 = scalar_select %p31, %s33, %s24
      %p35 = scmp.ge.s32.totalorder %s34, 2
      %s36 = scalar_select %p35, 0, %s34
      %s37 = ssub.s32 %s24, %s36
      %p38 = scmp.eq.s32.totalorder %s37, 0
      %s40 = sadd.s32 %s39, 1
      %s41 = scalar_select %p38, %s39, %s40
      %p44 = pneg %p38
      %p45 = scmp.eq.s32.totalorder %s17, 7
      %p46 = por %p44, %p45
      %p47 = scmp.ne.s32.totalorder %s39, %s42
      %p48 = scmp.eq.s32.totalorder %s17, 0
      %p49 = por %p47, %p48
      %p50 = scmp.ne.s32.totalorder %s39, %s42
      %p51 = scmp.eq.s32.totalorder %s22, 7
      %p52 = por %p50, %p51
      %p53 = scmp.ne.s32.totalorder %s42, %s43
      %p54 = scmp.eq.s32.totalorder %s22, 0
      %p55 = por %p53, %p54
      %p56 = scmp.ne.s32.totalorder %s42, %s43
      %p57 = scmp.eq.s32.totalorder %s23, 7
      %p58 = por %p56, %p57
      %p60 = scmp.ne.s32.totalorder %s43, %s59
      %p61 = scmp.eq.s32.totalorder %s23, 0
      %p62 = por %p60, %p61
      %s63 = ssub.s32 %s25, %s32
      %p64 = scmp.eq.s32.totalorder %s63, 0
      %s66 = sadd.s32 %s65, 1
      %s67 = scalar_select %p64, %s65, %s66
      %p70 = pneg %p64
      %p71 = scmp.eq.s32.totalorder %s17, 7
      %p72 = por %p70, %p71
      %p73 = scmp.ne.s32.totalorder %s65, %s68
      %p74 = scmp.eq.s32.totalorder %s17, 0
      %p75 = por %p73, %p74
      %p76 = scmp.ne.s32.totalorder %s65, %s68
      %p77 = scmp.eq.s32.totalorder %s22, 7
      %p78 = por %p76, %p77
      %p79 = scmp.ne.s32.totalorder %s68, %s69
      %p80 = scmp.eq.s32.totalorder %s22, 0
      %p81 = por %p79, %p80
      %p82 = scmp.ne.s32.totalorder %s68, %s69
      %p83 = scmp.eq.s32.totalorder %s23, 7
      %p84 = por %p82, %p83
      %p86 = scmp.ne.s32.totalorder %s69, %s85
      %p87 = scmp.eq.s32.totalorder %s23, 0
      %p88 = por %p86, %p87
      %s89 = ssub.s32 %s25, %s32
      %p90 = scmp.eq.s32.totalorder %s89, 0
      %s92 = sadd.s32 %s91, 1
      %s93 = scalar_select %p90, %s91, %s92
      %p96 = pneg %p90
      %p97 = scmp.eq.s32.totalorder %s17, 7
      %p98 = por %p96, %p97
      %p99 = scmp.ne.s32.totalorder %s91, %s94
      %p100 = scmp.eq.s32.totalorder %s17, 0
      %p101 = por %p99, %p100
      %p102 = scmp.ne.s32.totalorder %s91, %s94
      %p103 = scmp.eq.s32.totalorder %s22, 7
      %p104 = por %p102, %p103
      %p105 = scmp.ne.s32.totalorder %s94, %s95
      %p106 = scmp.eq.s32.totalorder %s22, 0
      %p107 = por %p105, %p106
      %p108 = scmp.ne.s32.totalorder %s94, %s95
      %p109 = scmp.eq.s32.totalorder %s23, 7
      %p110 = por %p108, %p109
      %p112 = scmp.ne.s32.totalorder %s95, %s111
      %p113 = scmp.eq.s32.totalorder %s23, 0
      %p114 = por %p112, %p113
      %s115 = ssub.s32 %s25, %s32
      %p116 = scmp.eq.s32.totalorder %s115, 0
      %s118 = sadd.s32 %s117, 1
      %s119 = scalar_select %p116, %s117, %s118
      %p122 = pneg %p116
      %p123 = scmp.eq.s32.totalorder %s17, 7
      %p124 = por %p122, %p123
      %p125 = scmp.ne.s32.totalorder %s117, %s120
      %p126 = scmp.eq.s32.totalorder %s17, 0
      %p127 = por %p125, %p126
      %p128 = scmp.ne.s32.totalorder %s117, %s120
      %p129 = scmp.eq.s32.totalorder %s22, 7
      %p130 = por %p128, %p129
      %p131 = scmp.ne.s32.totalorder %s120, %s121
      %p132 = scmp.eq.s32.totalorder %s22, 0
      %p133 = por %p131, %p132
      %p134 = scmp.ne.s32.totalorder %s120, %s121
      %p135 = scmp.eq.s32.totalorder %s23, 7
      %p136 = por %p134, %p135
      %p138 = scmp.ne.s32.totalorder %s121, %s137
      %p139 = scmp.eq.s32.totalorder %s23, 0
      %p140 = por %p138, %p139
      %s142 = sadd.s32 %s141, 1
      %p145 = scmp.eq.s32.totalorder %s17, 7
      %p146 = scmp.ne.s32.totalorder %s141, %s143
      %p147 = scmp.eq.s32.totalorder %s17, 0
      %p148 = por %p146, %p147
      %p149 = scmp.ne.s32.totalorder %s141, %s143
      %p150 = scmp.eq.s32.totalorder %s22, 7
      %p151 = por %p149, %p150
      %p152 = scmp.ne.s32.totalorder %s143, %s144
      %p153 = scmp.eq.s32.totalorder %s22, 0
      %p154 = por %p152, %p153
      %p155 = scmp.ne.s32.totalorder %s143, %s144
      %p156 = scmp.eq.s32.totalorder %s23, 7
      %p157 = por %p155, %p156
      %p159 = scmp.ne.s32.totalorder %s144, %s158
      %p160 = scmp.eq.s32.totalorder %s23, 0
      %p161 = por %p159, %p160
      %s162 = ssub.s32 %s24, %s36
      %p163 = scmp.eq.s32.totalorder %s162, 0
      %s165 = sadd.s32 %s164, 1
      %s166 = scalar_select %p163, %s164, %s165
      %p169 = pneg %p163
      %p170 = scmp.eq.s32.totalorder %s17, 7
      %p171 = por %p169, %p170
      %p172 = scmp.ne.s32.totalorder %s164, %s167
      %p173 = scmp.eq.s32.totalorder %s17, 0
      %p174 = por %p172, %p173
      %p175 = scmp.ne.s32.totalorder %s164, %s167
      %p176 = scmp.eq.s32.totalorder %s22, 7
      %p177 = por %p175, %p176
      %p178 = scmp.ne.s32.totalorder %s167, %s168
      %p179 = scmp.eq.s32.totalorder %s22, 0
      %p180 = por %p178, %p179
      %p181 = scmp.ne.s32.totalorder %s167, %s168
      %p182 = scmp.eq.s32.totalorder %s23, 7
      %p183 = por %p181, %p182
      %p185 = scmp.ne.s32.totalorder %s168, %s184
      %p186 = scmp.eq.s32.totalorder %s23, 0
      %p187 = por %p185, %p186
      %p188 = scmp.le.s32.totalorder 1, %s17
      %p189 = scmp.lt.s32.totalorder %s17, 9
      %p190 = pnand %p188, %p189
      %p191 = pneg %p190
      // Predicated region
      $region9: #{crosscoder_forward.1} parent=5 // pred_check
        _
      $region10: #{crosscoder_forward.1} parent=5 // pred_check_branch
        %193 = sbr.rel (%p190) target = $region12
      $region11: #{crosscoder_forward.1} parent=5 // pred_region
        %s194 = ssub.s32 %s17, 1
        // Predicated region
        $region13: #{crosscoder_forward.1} parent=11 // pred_check
          %p195 = pneg %p154
        $region14: #{crosscoder_forward.1} parent=11 // pred_check_branch
          %197 = sbr.rel (%p195) target = $region16
        $region15: #{crosscoder_forward.1} parent=11 // pred_region
          _
        $region16: #{crosscoder_forward.1} parent=11 // pred_fallthru
          _
      $region12: #{crosscoder_forward.1} parent=5 // pred_fallthru
        _
      %p198 = scmp.lt.s32.totalorder %s17, 8
      // Predicated region
      $region17: #{crosscoder_forward.1} parent=5 // pred_check
        %p199 = pneg %p198
      $region18: #{crosscoder_forward.1} parent=5 // pred_check_branch
        %201 = sbr.rel (%p199) target = $region20
      $region19: #{crosscoder_forward.1} parent=5 // pred_region
        // Predicated region
        $region21: #{crosscoder_forward.1} parent=19 // pred_check
          %p202 = pneg %p49
        $region22: #{crosscoder_forward.1} parent=19 // pred_check_branch
          %204 = sbr.rel (%p202) target = $region24
        $region23: #{crosscoder_forward.1} parent=19 // pred_region
          %p205 = scmp.lt.s32.totalorder %s24, 1
          %s206 = scalar_select %p205, %s24, 1
          %s207 = smul.addr %s206, 2
          %s208 = smul.addr %s207, 8
          %s209 = scalar_lea.vmem %s0, %s208
        $region24: #{crosscoder_forward.1} parent=19 // pred_fallthru
          _
        // Predicated region
        $region25: #{crosscoder_forward.1} parent=19 // pred_check
          %p210 = pneg %p75
        $region26: #{crosscoder_forward.1} parent=19 // pred_check_branch
          %212 = sbr.rel (%p210) target = $region28
        $region27: #{crosscoder_forward.1} parent=19 // pred_region
          %s213 = sand.u32 %s65, 1
          %s214 = scalar_lea.sflag [#allocation3], %s213
          %s215 = sand.u32 %s65, 1
          %s216 = smul.addr %s215, 512
          %s217 = scalar_lea.vmem [#allocation2], %s216
          %s218 = smul.u32 2, %s25
          %s220 = ssub.s32 8192, 8192
          %221 = vsyncadd %s214, %s220
          %s222 = smul.addr %s218, 128
          %s223 = scalar_lea.hbm %s1, %s222
          %s224 = sshll.u32 %s217, 4
          %s225 = int_to_ptr.vmem [resolvable:$true] %s224
          %230 = dma.hbm_to_vmem [thread:$0]  %s223, 8192, %s225, %s214, 1024, 256, 16
        $region28: #{crosscoder_forward.1} parent=19 // pred_fallthru
          _
        // Predicated region
        $region29: #{crosscoder_forward.1} parent=19 // pred_check
          %p231 = pneg %p101
        $region30: #{crosscoder_forward.1} parent=19 // pred_check_branch
          %233 = sbr.rel (%p231) target = $region32
        $region31: #{crosscoder_forward.1} parent=19 // pred_region
          %s234 = smul.u32 2, %s25
          %p235 = scmp.lt.s32.totalorder %s234, 7
          %s236 = scalar_select %p235, %s234, 7
          %s237 = scalar_lea.vmem %s2, %s236
          %s238 = smul.u32 2, %s25
        $region32: #{crosscoder_forward.1} parent=19 // pred_fallthru
          _
        // Predicated region
        $region33: #{crosscoder_forward.1} parent=19 // pred_check
          %p239 = pneg %p127
        $region34: #{crosscoder_forward.1} parent=19 // pred_check_branch
          %241 = sbr.rel (%p239) target = $region36
        $region35: #{crosscoder_forward.1} parent=19 // pred_region
          %s242 = sand.u32 %s117, 1
          %s243 = scalar_lea.sflag [#allocation5], %s242
          %s244 = sand.u32 %s117, 1
          %s245 = smul.addr %s244, 512
          %s246 = scalar_lea.vmem [#allocation4], %s245
          %s247 = smul.u32 32, %s25
          %s249 = ssub.s32 8192, 8192
          %250 = vsyncadd %s243, %s249
          %s251 = smul.addr %s247, 2
          %s252 = smul.addr %s251, 128
          %s253 = scalar_lea.hbm %s3, %s252
          %s254 = sshll.u32 %s246, 4
          %s255 = int_to_ptr.vmem [resolvable:$true] %s254
          %260 = dma.hbm_to_vmem [thread:$0]  %s253, 8192, %s255, %s243, 256, 256, 16
        $region36: #{crosscoder_forward.1} parent=19 // pred_fallthru
          _
      $region20: #{crosscoder_forward.1} parent=5 // pred_fallthru
        _
      %p261 = scmp.le.s32.totalorder 1, %s17
      %p262 = scmp.lt.s32.totalorder %s17, 9
      %p263 = pnand %p261, %p262
      %p264 = pneg %p263
      // Predicated region
      $region37: #{crosscoder_forward.1} parent=5 // pred_check
        _
      $region38: #{crosscoder_forward.1} parent=5 // pred_check_branch
        %266 = sbr.rel (%p263) target = $region40
      $region39: #{crosscoder_forward.1} parent=5 // pred_region
        %s267 = ssub.s32 %s17, 1
        %s268 = sand.u32 %s68, 1
        %s269 = scalar_lea.sflag [#allocation3], %s268
        %s270 = sand.u32 %s68, 1
        %s271 = smul.addr %s270, 512
        %s272 = scalar_lea.vmem [#allocation2], %s271
        // Predicated region
        $region41: #{crosscoder_forward.1} parent=39 // pred_check
          %p273 = pneg %p81
        $region42: #{crosscoder_forward.1} parent=39 // pred_check_branch
          %275 = sbr.rel (%p273) target = $region44
        $region43: #{crosscoder_forward.1} parent=39 // pred_region
          %276 = dma.done %s269, 8192
        $region44: #{crosscoder_forward.1} parent=39 // pred_fallthru
          _
        %s277 = sand.u32 %s120, 1
        %s278 = scalar_lea.sflag [#allocation5], %s277
        %s279 = sand.u32 %s120, 1
        %s280 = smul.addr %s279, 512
        %s281 = scalar_lea.vmem [#allocation4], %s280
        // Predicated region
        $region45: #{crosscoder_forward.1} parent=39 // pred_check
          %p282 = pneg %p133
        $region46: #{crosscoder_forward.1} parent=39 // pred_check_branch
          %284 = sbr.rel (%p282) target = $region48
        $region47: #{crosscoder_forward.1} parent=39 // pred_region
          %285 = dma.done %s278, 8192
        $region48: #{crosscoder_forward.1} parent=39 // pred_fallthru
          _
        %p286 = scmp.lt.s32.totalorder %s26, 1
        %s287 = scalar_select %p286, %s26, 1
        %s288 = smul.addr %s287, 2
        %s289 = smul.addr %s288, 8
        %s290 = scalar_lea.vmem %s0, %s289
        %p291 = pneg %p55
        %p292 = pneg %p52
        %s293 = sand.u32 %s68, 1
        %s294 = scalar_lea.sflag [#allocation3], %s293
        %s295 = sand.u32 %s68, 1
        %s296 = smul.addr %s295, 512
        %s297 = scalar_lea.vmem [#allocation2], %s296
        %p298 = pneg %p81
        %p299 = pneg %p78
        %s300 = smul.u32 2, %s27
        %p301 = scmp.lt.s32.totalorder %s300, 7
        %s302 = scalar_select %p301, %s300, 7
        %s303 = scalar_lea.vmem %s2, %s302
        %p304 = pneg %p107
        %p305 = pneg %p104
        %s306 = sand.u32 %s120, 1
        %s307 = scalar_lea.sflag [#allocation5], %s306
        %s308 = sand.u32 %s120, 1
        %s309 = smul.addr %s308, 512
        %s310 = scalar_lea.vmem [#allocation4], %s309
        %p311 = pneg %p133
        %p312 = pneg %p130
        %p313 = pneg %p154
        %p314 = pneg %p151
        %p315 = pneg %p180
        %p316 = pneg %p177
        %p317 = scmp.lt.s32.totalorder %s26, 1
        %s318 = scalar_select %p317, %s26, 1
        %s319 = smul.addr %s318, 2
        %s320 = smul.addr %s319, 8
        %s321 = scalar_lea.vmem %s5, %s320
        %p322 = scmp.lt.s32.totalorder %s26, 1
        %s323 = scalar_select %p322, %s26, 1
        %s324 = smul.addr %s323, 2
        %s325 = smul.addr %s324, 8
        %s326 = scalar_lea.vmem %s0, %s325
        %s327 = smul.u32 2, %s27
        %s328 = smul.u32 2, %s27
        %p329 = scmp.lt.s32.totalorder %s328, 7
        %s330 = scalar_select %p329, %s328, 7
        %s331 = scalar_lea.vmem %s2, %s330
        %s332 = smul.u32 2, %s27
        %s333 = smul.u32 32, %s27
        %p334 = scmp.lt.s32.totalorder %s26, 1
        %s335 = scalar_select %p334, %s26, 1
        %s336 = smul.addr %s335, 2
        %s337 = smul.addr %s336, 8
        %s338 = scalar_lea.vmem %s5, %s337
        %v339 = vld [vmem:[%s326] sm:$0xff]
        %v340 = vld [vmem:[%s326 + $0x8] sm:$0xff]
        %v341 = vld [vmem:[%s272] sm:$0xff]
        %v342 = vld [vmem:[%s272 + $0x8] sm:$0xff]
        %v343 = vld [vmem:[%s272 + $0x10] sm:$0xff]
        %v344 = vld [vmem:[%s272 + $0x18] sm:$0xff]
        %v345 = vld [vmem:[%s272 + $0x20] sm:$0xff]
        %v346 = vld [vmem:[%s272 + $0x28] sm:$0xff]
        %v347 = vld [vmem:[%s272 + $0x30] sm:$0xff]
        %v348 = vld [vmem:[%s272 + $0x38] sm:$0xff]
        %v349 = vld [vmem:[%s272 + $0x40] sm:$0xff]
        %v350 = vld [vmem:[%s272 + $0x48] sm:$0xff]
        %v351 = vld [vmem:[%s272 + $0x50] sm:$0xff]
        %v352 = vld [vmem:[%s272 + $0x58] sm:$0xff]
        %v353 = vld [vmem:[%s272 + $0x60] sm:$0xff]
        %v354 = vld [vmem:[%s272 + $0x68] sm:$0xff]
        %v355 = vld [vmem:[%s272 + $0x70] sm:$0xff]
        %v356 = vld [vmem:[%s272 + $0x78] sm:$0xff]
        %v357 = vld [vmem:[%s272 + $0x80] sm:$0xff]
        %v358 = vld [vmem:[%s272 + $0x88] sm:$0xff]
        %v359 = vld [vmem:[%s272 + $0x90] sm:$0xff]
        %v360 = vld [vmem:[%s272 + $0x98] sm:$0xff]
        %v361 = vld [vmem:[%s272 + $0xa0] sm:$0xff]
        %v362 = vld [vmem:[%s272 + $0xa8] sm:$0xff]
        %v363 = vld [vmem:[%s272 + $0xb0] sm:$0xff]
        %v364 = vld [vmem:[%s272 + $0xb8] sm:$0xff]
        %v365 = vld [vmem:[%s272 + $0xc0] sm:$0xff]
        %v366 = vld [vmem:[%s272 + $0xc8] sm:$0xff]
        %v367 = vld [vmem:[%s272 + $0xd0] sm:$0xff]
        %v368 = vld [vmem:[%s272 + $0xd8] sm:$0xff]
        %v369 = vld [vmem:[%s272 + $0xe0] sm:$0xff]
        %v370 = vld [vmem:[%s272 + $0xe8] sm:$0xff]
        %v371 = vld [vmem:[%s272 + $0xf0] sm:$0xff]
        %v372 = vld [vmem:[%s272 + $0xf8] sm:$0xff]
        %v373 = vld [vmem:[%s272 + $0x100] sm:$0xff]
        %v374 = vld [vmem:[%s272 + $0x108] sm:$0xff]
        %v375 = vld [vmem:[%s272 + $0x110] sm:$0xff]
        %v376 = vld [vmem:[%s272 + $0x118] sm:$0xff]
        %v377 = vld [vmem:[%s272 + $0x120] sm:$0xff]
        %v378 = vld [vmem:[%s272 + $0x128] sm:$0xff]
        %v379 = vld [vmem:[%s272 + $0x130] sm:$0xff]
        %v380 = vld [vmem:[%s272 + $0x138] sm:$0xff]
        %v381 = vld [vmem:[%s272 + $0x140] sm:$0xff]
        %v382 = vld [vmem:[%s272 + $0x148] sm:$0xff]
        %v383 = vld [vmem:[%s272 + $0x150] sm:$0xff]
        %v384 = vld [vmem:[%s272 + $0x158] sm:$0xff]
        %v385 = vld [vmem:[%s272 + $0x160] sm:$0xff]
        %v386 = vld [vmem:[%s272 + $0x168] sm:$0xff]
        %v387 = vld [vmem:[%s272 + $0x170] sm:$0xff]
        %v388 = vld [vmem:[%s272 + $0x178] sm:$0xff]
        %v389 = vld [vmem:[%s272 + $0x180] sm:$0xff]
        %v390 = vld [vmem:[%s272 + $0x188] sm:$0xff]
        %v391 = vld [vmem:[%s272 + $0x190] sm:$0xff]
        %v392 = vld [vmem:[%s272 + $0x198] sm:$0xff]
        %v393 = vld [vmem:[%s272 + $0x1a0] sm:$0xff]
        %v394 = vld [vmem:[%s272 + $0x1a8] sm:$0xff]
        %v395 = vld [vmem:[%s272 + $0x1b0] sm:$0xff]
        %v396 = vld [vmem:[%s272 + $0x1b8] sm:$0xff]
        %v397 = vld [vmem:[%s272 + $0x1c0] sm:$0xff]
        %v398 = vld [vmem:[%s272 + $0x1c8] sm:$0xff]
        %v399 = vld [vmem:[%s272 + $0x1d0] sm:$0xff]
        %v400 = vld [vmem:[%s272 + $0x1d8] sm:$0xff]
        %v401 = vld [vmem:[%s272 + $0x1e0] sm:$0xff]
        %v402 = vld [vmem:[%s272 + $0x1e8] sm:$0xff]
        %v403 = vld [vmem:[%s272 + $0x1f0] sm:$0xff]
        %v404 = vld [vmem:[%s272 + $0x1f8] sm:$0xff]
        %v405 = vld [vmem:[%s331] sm:$0x3]
        %v407 = vlaneseq
        %v408 = vshrl.u32 %v407, 7
        %v409 = vsub.s32 0, %v408
        %v410 = vrot.slane %v405, %v409
        %v411 = vlaneseq
        %v412 = vshrl.u32 %v411, 7
        %v413 = vsub.s32 1, %v412
        %v414 = vrot.slane %v405, %v413
        %417 = vmatprep.subr.mxu0 %v372
        %418 = vmatpush1.msra.mxu0 %v371
        %419 = vmatprep.subr.mxu0 %v370
        %420 = vmatpush1.msra.mxu0 %v369
        %421 = vmatprep.subr.mxu0 %v368
        %422 = vmatpush1.msra.mxu0 %v367
        %423 = vmatprep.subr.mxu0 %v366
        %424 = vmatpush1.msra.mxu0 %v365
        %425 = vmatprep.subr.mxu0 %v364
        %426 = vmatpush1.msra.mxu0 %v363
        %427 = vmatprep.subr.mxu0 %v362
        %428 = vmatpush1.msra.mxu0 %v361
        %429 = vmatprep.subr.mxu0 %v360
        %430 = vmatpush1.msra.mxu0 %v359
        %431 = vmatprep.subr.mxu0 %v358
        %432 = vmatpush1.msra.mxu0 %v357
        %433 = vmatprep.subr.mxu0 %v356
        %434 = vmatpush1.msra.mxu0 %v355
        %435 = vmatprep.subr.mxu0 %v354
        %436 = vmatpush1.msra.mxu0 %v353
        %437 = vmatprep.subr.mxu0 %v352
        %438 = vmatpush1.msra.mxu0 %v351
        %439 = vmatprep.subr.mxu0 %v350
        %440 = vmatpush1.msra.mxu0 %v349
        %441 = vmatprep.subr.mxu0 %v348
        %442 = vmatpush1.msra.mxu0 %v347
        %443 = vmatprep.subr.mxu0 %v346
        %444 = vmatpush1.msra.mxu0 %v345
        %445 = vmatprep.subr.mxu0 %v344
        %446 = vmatpush1.msra.mxu0 %v343
        %447 = vmatprep.subr.mxu0 %v342
        %448 = vmatpush1.msra.mxu0 %v341
        %449 = vmatprep.subr.mxu0 %v404
        %450 = vmatpush2.msra.mxu0 %v403
        %451 = vmatprep.subr.mxu0 %v402
        %452 = vmatpush2.msra.mxu0 %v401
        %453 = vmatprep.subr.mxu0 %v400
        %454 = vmatpush2.msra.mxu0 %v399
        %455 = vmatprep.subr.mxu0 %v398
        %456 = vmatpush2.msra.mxu0 %v397
        %457 = vmatprep.subr.mxu0 %v396
        %458 = vmatpush2.msra.mxu0 %v395
        %459 = vmatprep.subr.mxu0 %v394
        %460 = vmatpush2.msra.mxu0 %v393
        %461 = vmatprep.subr.mxu0 %v392
        %462 = vmatpush2.msra.mxu0 %v391
        %463 = vmatprep.subr.mxu0 %v390
        %464 = vmatpush2.msra.mxu0 %v389
        %465 = vmatprep.subr.mxu0 %v388
        %466 = vmatpush2.msra.mxu0 %v387
        %467 = vmatprep.subr.mxu0 %v386
        %468 = vmatpush2.msra.mxu0 %v385
        %469 = vmatprep.subr.mxu0 %v384
        %470 = vmatpush2.msra.mxu0 %v383
        %471 = vmatprep.subr.mxu0 %v382
        %472 = vmatpush2.msra.mxu0 %v381
        %473 = vmatprep.subr.mxu0 %v380
        %474 = vmatpush2.msra.mxu0 %v379
        %475 = vmatprep.subr.mxu0 %v378
        %476 = vmatpush2.msra.mxu0 %v377
        %477 = vmatprep.subr.mxu0 %v376
        %478 = vmatpush2.msra.mxu0 %v375
        %479 = vmatprep.subr.mxu0 %v374
        %480 = vmatpush2.msra.mxu0 %v373
        %481 = vmatprep.mubr.f32.mxu0 %v340
        %482 = vmatmul.mubr.f32.gmra.mxu0 %v339
        %v483 = vpop.f32.mrf.mxu0
        %v484 = vadd.f32 %v410, %v483
        %v485 = vpop.f32.mrf.mxu0
        %v486 = vadd.f32 %v414, %v485
        %487 = vdwg.mxu0
        %v488 = vmax.f32 %v484, 0.0
        %v489 = vmax.f32 %v486, 0.0
        %v490 = vld [vmem:[%s281] sm:$0xff]
        %v491 = vld [vmem:[%s281 + $0x8] sm:$0xff]
        %v492 = vld [vmem:[%s281 + $0x10] sm:$0xff]
        %v493 = vld [vmem:[%s281 + $0x18] sm:$0xff]
        %v494 = vld [vmem:[%s281 + $0x20] sm:$0xff]
        %v495 = vld [vmem:[%s281 + $0x28] sm:$0xff]
        %v496 = vld [vmem:[%s281 + $0x30] sm:$0xff]
        %v497 = vld [vmem:[%s281 + $0x38] sm:$0xff]
        %v498 = vld [vmem:[%s281 + $0x40] sm:$0xff]
        %v499 = vld [vmem:[%s281 + $0x48] sm:$0xff]
        %v500 = vld [vmem:[%s281 + $0x50] sm:$0xff]
        %v501 = vld [vmem:[%s281 + $0x58] sm:$0xff]
        %v502 = vld [vmem:[%s281 + $0x60] sm:$0xff]
        %v503 = vld [vmem:[%s281 + $0x68] sm:$0xff]
        %v504 = vld [vmem:[%s281 + $0x70] sm:$0xff]
        %v505 = vld [vmem:[%s281 + $0x78] sm:$0xff]
        %v506 = vld [vmem:[%s281 + $0x80] sm:$0xff]
        %v507 = vld [vmem:[%s281 + $0x88] sm:$0xff]
        %v508 = vld [vmem:[%s281 + $0x90] sm:$0xff]
        %v509 = vld [vmem:[%s281 + $0x98] sm:$0xff]
        %v510 = vld [vmem:[%s281 + $0xa0] sm:$0xff]
        %v511 = vld [vmem:[%s281 + $0xa8] sm:$0xff]
        %v512 = vld [vmem:[%s281 + $0xb0] sm:$0xff]
        %v513 = vld [vmem:[%s281 + $0xb8] sm:$0xff]
        %v514 = vld [vmem:[%s281 + $0xc0] sm:$0xff]
        %v515 = vld [vmem:[%s281 + $0xc8] sm:$0xff]
        %v516 = vld [vmem:[%s281 + $0xd0] sm:$0xff]
        %v517 = vld [vmem:[%s281 + $0xd8] sm:$0xff]
        %v518 = vld [vmem:[%s281 + $0xe0] sm:$0xff]
        %v519 = vld [vmem:[%s281 + $0xe8] sm:$0xff]
        %v520 = vld [vmem:[%s281 + $0xf0] sm:$0xff]
        %v521 = vld [vmem:[%s281 + $0xf8] sm:$0xff]
        %v522 = vld [vmem:[%s281 + $0x100] sm:$0xff]
        %v523 = vld [vmem:[%s281 + $0x108] sm:$0xff]
        %v524 = vld [vmem:[%s281 + $0x110] sm:$0xff]
        %v525 = vld [vmem:[%s281 + $0x118] sm:$0xff]
        %v526 = vld [vmem:[%s281 + $0x120] sm:$0xff]
        %v527 = vld [vmem:[%s281 + $0x128] sm:$0xff]
        %v528 = vld [vmem:[%s281 + $0x130] sm:$0xff]
        %v529 = vld [vmem:[%s281 + $0x138] sm:$0xff]
        %v530 = vld [vmem:[%s281 + $0x140] sm:$0xff]
        %v531 = vld [vmem:[%s281 + $0x148] sm:$0xff]
        %v532 = vld [vmem:[%s281 + $0x150] sm:$0xff]
        %v533 = vld [vmem:[%s281 + $0x158] sm:$0xff]
        %v534 = vld [vmem:[%s281 + $0x160] sm:$0xff]
        %v535 = vld [vmem:[%s281 + $0x168] sm:$0xff]
        %v536 = vld [vmem:[%s281 + $0x170] sm:$0xff]
        %v537 = vld [vmem:[%s281 + $0x178] sm:$0xff]
        %v538 = vld [vmem:[%s281 + $0x180] sm:$0xff]
        %v539 = vld [vmem:[%s281 + $0x188] sm:$0xff]
        %v540 = vld [vmem:[%s281 + $0x190] sm:$0xff]
        %v541 = vld [vmem:[%s281 + $0x198] sm:$0xff]
        %v542 = vld [vmem:[%s281 + $0x1a0] sm:$0xff]
        %v543 = vld [vmem:[%s281 + $0x1a8] sm:$0xff]
        %v544 = vld [vmem:[%s281 + $0x1b0] sm:$0xff]
        %v545 = vld [vmem:[%s281 + $0x1b8] sm:$0xff]
        %v546 = vld [vmem:[%s281 + $0x1c0] sm:$0xff]
        %v547 = vld [vmem:[%s281 + $0x1c8] sm:$0xff]
        %v548 = vld [vmem:[%s281 + $0x1d0] sm:$0xff]
        %v549 = vld [vmem:[%s281 + $0x1d8] sm:$0xff]
        %v550 = vld [vmem:[%s281 + $0x1e0] sm:$0xff]
        %v551 = vld [vmem:[%s281 + $0x1e8] sm:$0xff]
        %v552 = vld [vmem:[%s281 + $0x1f0] sm:$0xff]
        %v553 = vld [vmem:[%s281 + $0x1f8] sm:$0xff]
        %554 = vmatprep.subr.mxu0 %v521
        %555 = vmatpush1.msra.mxu0 %v520
        %556 = vmatprep.subr.mxu0 %v519
        %557 = vmatpush1.msra.mxu0 %v518
        %558 = vmatprep.subr.mxu0 %v517
        %559 = vmatpush1.msra.mxu0 %v516
        %560 = vmatprep.subr.mxu0 %v515
        %561 = vmatpush1.msra.mxu0 %v514
        %562 = vmatprep.subr.mxu0 %v513
        %563 = vmatpush1.msra.mxu0 %v512
        %564 = vmatprep.subr.mxu0 %v511
        %565 = vmatpush1.msra.mxu0 %v510
        %566 = vmatprep.subr.mxu0 %v509
        %567 = vmatpush1.msra.mxu0 %v508
        %568 = vmatprep.subr.mxu0 %v507
        %569 = vmatpush1.msra.mxu0 %v506
        %570 = vmatprep.subr.mxu0 %v505
        %571 = vmatpush1.msra.mxu0 %v504
        %572 = vmatprep.subr.mxu0 %v503
        %573 = vmatpush1.msra.mxu0 %v502
        %574 = vmatprep.subr.mxu0 %v501
        %575 = vmatpush1.msra.mxu0 %v500
        %576 = vmatprep.subr.mxu0 %v499
        %577 = vmatpush1.msra.mxu0 %v498
        %578 = vmatprep.subr.mxu0 %v497
        %579 = vmatpush1.msra.mxu0 %v496
        %580 = vmatprep.subr.mxu0 %v495
        %581 = vmatpush1.msra.mxu0 %v494
        %582 = vmatprep.subr.mxu0 %v493
        %583 = vmatpush1.msra.mxu0 %v492
        %584 = vmatprep.subr.mxu0 %v491
        %585 = vmatpush1.msra.mxu0 %v490
        %586 = vmatprep.subr.mxu0 %v553
        %587 = vmatpush2.msra.mxu0 %v552
        %588 = vmatprep.subr.mxu0 %v551
        %589 = vmatpush2.msra.mxu0 %v550
        %590 = vmatprep.subr.mxu0 %v549
        %591 = vmatpush2.msra.mxu0 %v548
        %592 = vmatprep.subr.mxu0 %v547
        %593 = vmatpush2.msra.mxu0 %v546
        %594 = vmatprep.subr.mxu0 %v545
        %595 = vmatpush2.msra.mxu0 %v544
        %596 = vmatprep.subr.mxu0 %v543
        %597 = vmatpush2.msra.mxu0 %v542
        %598 = vmatprep.subr.mxu0 %v541
        %599 = vmatpush2.msra.mxu0 %v540
        %600 = vmatprep.subr.mxu0 %v539
        %601 = vmatpush2.msra.mxu0 %v538
        %602 = vmatprep.subr.mxu0 %v537
        %603 = vmatpush2.msra.mxu0 %v536
        %604 = vmatprep.subr.mxu0 %v535
        %605 = vmatpush2.msra.mxu0 %v534
        %606 = vmatprep.subr.mxu0 %v533
        %607 = vmatpush2.msra.mxu0 %v532
        %608 = vmatprep.subr.mxu0 %v531
        %609 = vmatpush2.msra.mxu0 %v530
        %610 = vmatprep.subr.mxu0 %v529
        %611 = vmatpush2.msra.mxu0 %v528
        %612 = vmatprep.subr.mxu0 %v527
        %613 = vmatpush2.msra.mxu0 %v526
        %614 = vmatprep.subr.mxu0 %v525
        %615 = vmatpush2.msra.mxu0 %v524
        %616 = vmatprep.subr.mxu0 %v523
        %617 = vmatpush2.msra.mxu0 %v522
        %618 = vmatprep.mubr.f32.mxu0 %v489
        %619 = vmatmul.mubr.f32.gmra.mxu0 %v488
        %v620 = vpop.f32.mrf.mxu0
        %v621 = vadd.f32 0.0, %v620
        %v622 = vpop.f32.mrf.mxu0
        %v623 = vadd.f32 0.0, %v622
        %624 = vdwg.mxu0
        %p625 = scmp.eq.s32.totalorder %s27, 0
        // Predicated region
        $region49: #{crosscoder_forward.1} parent=39 // pred_check
          %p626 = pneg %p625
        $region50: #{crosscoder_forward.1} parent=39 // pred_check_branch
          %628 = sbr.rel (%p626) target = $region52
        $region51: #{crosscoder_forward.1} parent=39 // pred_region
          %v629 = vld [vmem:[%s4] sm:$0x3]
          %v631 = vlaneseq
          %v632 = vshrl.u32 %v631, 7
          %v633 = vsub.s32 0, %v632
          %v634 = vrot.slane %v629, %v633
          %v635 = vlaneseq
          %v636 = vshrl.u32 %v635, 7
          %v637 = vsub.s32 1, %v636
          %v638 = vrot.slane %v629, %v637
          %v641 = vadd.f32 %v634, %v621
          %v642 = vadd.f32 %v638, %v623
          %643 = vst [vmem:[%s338] sm:$0xff] %v641
          %644 = vst [vmem:[%s338 + $0x8] sm:$0xff] %v642
        $region52: #{crosscoder_forward.1} parent=39 // pred_fallthru
          _
        %p645 = scmp.gt.s32.totalorder %s27, 0
        // Predicated region
        $region53: #{crosscoder_forward.1} parent=39 // pred_check
          %p646 = pneg %p645
        $region54: #{crosscoder_forward.1} parent=39 // pred_check_branch
          %648 = sbr.rel (%p646) target = $region56
        $region55: #{crosscoder_forward.1} parent=39 // pred_region
          %v649 = vld [vmem:[%s338] sm:$0xff]
          %v650 = vld [vmem:[%s338 + $0x8] sm:$0xff]
          %v651 = vadd.f32 %v649, %v621
          %v652 = vadd.f32 %v650, %v623
          %653 = vst [vmem:[%s338] sm:$0xff] %v651
          %654 = vst [vmem:[%s338 + $0x8] sm:$0xff] %v652
        $region56: #{crosscoder_forward.1} parent=39 // pred_fallthru
          _
        %p655 = scmp.lt.s32.totalorder %s26, 1
        %s656 = scalar_select %p655, %s26, 1
        %s657 = smul.addr %s656, 2
        %s658 = smul.addr %s657, 8
        %s659 = scalar_lea.vmem %s5, %s658
        // Predicated region
        $region57: #{crosscoder_forward.1} parent=39 // pred_check
          %p660 = pneg %p177
        $region58: #{crosscoder_forward.1} parent=39 // pred_check_branch
          %662 = sbr.rel (%p660) target = $region60
        $region59: #{crosscoder_forward.1} parent=39 // pred_region
          _
        $region60: #{crosscoder_forward.1} parent=39 // pred_fallthru
          _
      $region40: #{crosscoder_forward.1} parent=5 // pred_fallthru
        _
      %p663 = scmp.le.s32.totalorder 2, %s17
      // Predicated region
      $region61: #{crosscoder_forward.1} parent=5 // pred_check
        %p664 = pneg %p663
      $region62: #{crosscoder_forward.1} parent=5 // pred_check_branch
        %666 = sbr.rel (%p664) target = $region64
      $region63: #{crosscoder_forward.1} parent=5 // pred_region
        %s667 = ssub.s32 %s17, 2
        // Predicated region
        $region65: #{crosscoder_forward.1} parent=63 // pred_check
          %p668 = pneg %p183
        $region66: #{crosscoder_forward.1} parent=63 // pred_check_branch
          %670 = sbr.rel (%p668) target = $region68
        $region67: #{crosscoder_forward.1} parent=63 // pred_region
          %p671 = scmp.lt.s32.totalorder %s28, 1
          %s672 = scalar_select %p671, %s28, 1
          %s673 = smul.addr %s672, 2
          %s674 = smul.addr %s673, 8
          %s675 = scalar_lea.vmem %s5, %s674
        $region68: #{crosscoder_forward.1} parent=63 // pred_fallthru
          _
      $region64: #{crosscoder_forward.1} parent=5 // pred_fallthru
        _
    $region6: #{crosscoder_forward.1} parent=1 // loop_footer
      %s21 = sadd.s32 1, %s17
    $region7: #{crosscoder_forward.1} parent=1 // loop_footer_branch
      %16 = sbr.rel target = $region3
    $region8: #{crosscoder_forward.1} parent=1 // loop_exit
      _
    %676 = vsyncpa [#allocation3], 1
    %s677 = scalar_lea.sflag [#allocation3], 1
    %678 = vsyncpa %s677, 1
    %679 = vsyncpa [#allocation5], 1
    %s680 = scalar_lea.sflag [#allocation5], 1
    %681 = vsyncpa %s680, 1

</llo_original>
